<compile_context>
chip_gen: v7x
topology: tpu7x:2x2x1
jax: 0.10.0
libtpu: 0.0.40
codegen_flags: <defaults>
</compile_context>

<pallas_src>
import jax
import jax.numpy as jnp
from jax.experimental import pallas as pl
from jax.experimental.pallas import tpu as pltpu


_BLOCK_BYTES = 4 * 1024 * 1024      # target size of one f32 in/out block


def _round_up(a, b):
    return (a + b - 1) // b * b


def _choose_batch_tile(N):
    """(nb, n_pad): sublane extent of a block and padded batch size."""
    if N <= 8:
        return N, N                  # full-dim block, no padding
    if N % 8 == 0:
        return 8, N
    if N <= 32:
        return N, N                  # full-dim block avoids a pad pass
    return 8, _round_up(N, 8)        # ragged fallback (extra pad/slice pass)


def _choose_hw_tile(HW, max_lanes, min_blocks):
    """(hw_tile, hw_pad): lane extent of a block and padded spatial size.

    Prefers a multiple of 128 that exactly divides HW (no pad / no slice) and
    tries to yield at least `min_blocks` spatial blocks (v7x megacore).
    """
    if HW % 128 == 0:
        units = HW // 128
        max_units = min(max_lanes // 128, units)
        if min_blocks > 1 and units >= min_blocks:
            max_units = min(max_units, units // min_blocks)
        for k in range(max_units, 0, -1):
            if units % k == 0:
                return 128 * k, HW                    # exact: no padding
    # Ragged fallback: pad HW up to a whole number of 128-lane tiles.
    n_blocks = max(pl.cdiv(HW, max_lanes), min_blocks)
    hw_tile = _round_up(pl.cdiv(HW, n_blocks), 128)
    n_blocks = pl.cdiv(HW, hw_tile)
    return hw_tile, hw_tile * n_blocks


def _upchannel_kernel(w_ref, b_ref, x_ref, o_ref):
    # w_ref, b_ref : (3,) f32 in SMEM
    # x_ref        : (nb, hw_tile) f32 in VMEM -- current (batch, spatial) tile
    # o_ref        : (nb, hw_tile)      in VMEM -- channel slab `co` of that tile
    co = pl.program_id(2)
    o_ref[...] = (x_ref[...] * w_ref[co] + b_ref[co]).astype(o_ref.dtype)


def upchanneler_pallas(x_nchw, weight, bias, *, out_dtype=jnp.float32):
    """nn.Conv2d(1, 3, kernel_size=1) forward. x_nchw: (N, 1, H, W)."""
    N, C_in, H, W = x_nchw.shape
    assert C_in == 1
    HW = H * W

    # ---- tiling ---------------------------------------------------------
    nb, n_pad = _choose_batch_tile(N)
    batch_blocks = n_pad // nb
    max_lanes = max(128, (_BLOCK_BYTES // (nb * 4)) // 128 * 128)
    min_hw_blocks = 2 if batch_blocks < 2 else 1          # feed both v7x TCs
    hw_tile, hw_pad = _choose_hw_tile(HW, max_lanes, min_hw_blocks)
    n_hw_blocks = hw_pad // hw_tile

    x2d = x_nchw.reshape(N, HW).astype(jnp.float32)
    padded = (n_pad, hw_pad) != (N, HW)
    if padded:
        # Only for genuinely ragged shapes (N > 32 and N % 8 != 0, or
        # H*W % 128 != 0): costs one extra HBM pass over x.
        x2d = jnp.pad(x2d, ((0, n_pad - N), (0, hw_pad - HW)))

    w_s = weight.reshape(3).astype(jnp.float32)     # (C_out,) scalars -> SMEM
    b_s = bias.reshape(3).astype(jnp.float32)

    grid = (batch_blocks, n_hw_blocks, 3)

    out = pl.pallas_call(
        _upchannel_kernel,
        out_shape=jax.ShapeDtypeStruct((n_pad, 3 * hw_pad), out_dtype),
        grid_spec=pltpu.PrefetchScalarGridSpec(
            num_scalar_prefetch=0,
            grid=grid,
            in_specs=[
                pl.BlockSpec(memory_space=pltpu.MemorySpace.SMEM),  # weight (3,)
                pl.BlockSpec(memory_space=pltpu.MemorySpace.SMEM),  # bias   (3,)
                # Input block index ignores the channel axis, so the same
                # (nb, hw_tile) tile stays resident for the 3 innermost steps.
                pl.BlockSpec((nb, hw_tile), lambda bi, hj, co: (bi, hj)),
            ],
            # Column block  co * n_hw_blocks + hj  ==  element offset
            # co * hw_pad + hj * hw_tile, i.e. exactly the NCHW channel plane.
            out_specs=pl.BlockSpec(
                (nb, hw_tile),
                lambda bi, hj, co: (bi, co * n_hw_blocks + hj)),
        ),
        compiler_params=pltpu.CompilerParams(
            dimension_semantics=("parallel", "parallel", "arbitrary"),
            # ~16 MiB of double-buffered blocks; 40 MiB leaves headroom while
            # staying well under v7x's 64 MiB physical VMEM (and above v5e's
            # 16 MiB scoped default).
            vmem_limit_bytes=40 * 1024 * 1024,
        ),
    )(w_s, b_s, x2d)

    # (n_pad, 3*hw_pad) has the same row-major layout as (n_pad, 3, hw_pad);
    # the reshape is free.  The slice only exists in the padded fallback.
    if padded:
        return out.reshape(n_pad, 3, hw_pad)[:N, :, :HW].reshape(N, 3, H, W)
    return out.reshape(N, 3, H, W)


def original_model(x):
    # TODO(synk): `original_model` is an injected submodule not defined in the
    # source file; treated as identity here.  Folding the 1x1 upchannel
    # (3 scalar FMAs/pixel) into that model's first conv/matmul weights would
    # remove this kernel's HBM round-trip entirely -- the largest possible win.
    return x


def modified_model_forward(x, weight, bias):
    x = upchanneler_pallas(x, weight, bias)
    return original_model(x)


if __name__ == "__main__":
    key = jax.random.PRNGKey(0)
    k_x, k_w, k_b = jax.random.split(key, 3)

    # Small shapes consistent with the module: NCHW with a single input channel.
    N, C, H, W = 2, 1, 16, 16
    x = jax.random.normal(k_x, (N, C, H, W), dtype=jnp.float32)

    # Parameters mimicking nn.Conv2d(1, 3, kernel_size=1): weight (3,1,1,1), bias (3,)
    weight = jax.random.uniform(k_w, (3, 1, 1, 1), jnp.float32, -1.0, 1.0)
    bias = jax.random.uniform(k_b, (3,), jnp.float32, -1.0, 1.0)

    out = modified_model_forward(x, weight, bias)
    out = jax.block_until_ready(out)

    # Pure-JAX reference of the same 1x1 conv (C_in = 1).
    ref = weight.reshape(1, 3, 1, 1) * x + bias.reshape(1, 3, 1, 1)
    assert out.shape == (N, 3, H, W)
    assert jnp.allclose(out, ref, atol=1e-5, rtol=1e-5)

    print("KERNEL_OK")
</pallas_src>

<mosaic_0001>
module attributes {stable_mosaic.version = 11 : i64} {
  func.func @_upchannel_kernel(%arg0: i32, %arg1: i32, %arg2: i32, %arg3: memref<3xf32, #tpu.memory_space<smem>>, %arg4: memref<3xf32, #tpu.memory_space<smem>>, %arg5: memref<2x128xf32, #tpu.memory_space<vmem>>, %arg6: memref<2x128xf32, #tpu.memory_space<vmem>>) attributes {dimension_semantics = [#tpu.dimension_semantics<parallel>, #tpu.dimension_semantics<parallel>, #tpu.dimension_semantics<arbitrary>], iteration_bounds = array<i64: 1, 2, 3>, scalar_prefetch = 0 : i64, scratch_operands = 0 : i64, tpu.core_type = #tpu.core_type<tc>, window_params = [{transform_indices = @transform_0, window_bounds = array<i64: 3>}, {transform_indices = @transform_1, window_bounds = array<i64: 3>}, {transform_indices = @transform_2, window_bounds = array<i64: 2, 128>}, {transform_indices = @transform_3, window_bounds = array<i64: 2, 128>}]} {
    %c0 = arith.constant 0 : index
    %c0_0 = arith.constant 0 : index
    %0 = vector.load %arg5[%c0, %c0_0] : memref<2x128xf32, #tpu.memory_space<vmem>>, vector<2x128xf32>
    %1 = arith.index_cast %arg2 : i32 to index
    %2 = memref.load %arg3[%1] : memref<3xf32, #tpu.memory_space<smem>>
    %3 = vector.broadcast %2 : f32 to vector<2x128xf32>
    %4 = arith.mulf %0, %3 : vector<2x128xf32>
    %5 = arith.index_cast %arg2 : i32 to index
    %6 = memref.load %arg4[%5] : memref<3xf32, #tpu.memory_space<smem>>
    %7 = vector.broadcast %6 : f32 to vector<2x128xf32>
    %8 = arith.addf %4, %7 : vector<2x128xf32>
    %c0_1 = arith.constant 0 : index
    %c0_2 = arith.constant 0 : index
    %9 = vector.load %arg6[%c0_1, %c0_2] : memref<2x128xf32, #tpu.memory_space<vmem>>, vector<2x128xf32>
    tpu.vector_store %arg6[%c0_1, %c0_2], %8 {strides = array<i32>} : memref<2x128xf32, #tpu.memory_space<vmem>>, vector<2x128xf32>,
    return
  }
  func.func @transform_0(%arg0: i32, %arg1: i32, %arg2: i32) -> i32 {
    %c0_i32 = arith.constant 0 : i32
    %c0_i32_0 = arith.constant 0 : i32
    return %c0_i32 : i32
  }
  func.func @transform_1(%arg0: i32, %arg1: i32, %arg2: i32) -> i32 {
    %c0_i32 = arith.constant 0 : i32
    %c0_i32_0 = arith.constant 0 : i32
    return %c0_i32 : i32
  }
  func.func @transform_2(%arg0: i32, %arg1: i32, %arg2: i32) -> (i32, i32) {
    %c0_i32 = arith.constant 0 : i32
    return %arg0, %arg1 : i32, i32
  }
  func.func @transform_3(%arg0: i32, %arg1: i32, %arg2: i32) -> (i32, i32) {
    %c2_i32 = arith.constant 2 : i32
    %0 = arith.muli %arg2, %c2_i32 : i32
    %1 = arith.addi %0, %arg1 : i32
    %c0_i32 = arith.constant 0 : i32
    return %arg0, %1 : i32, i32
  }
}

</mosaic_0001>

<llo_original>
// kernel: tpu_custom_call.1
$region0: #{tpu_custom_call.1}
  #allocation0 [shape = 'u32[]', space=smem, size = 0x4, offset = 0x4, fixed_abs, tag = 'smem constant byte address 0x4 - core index']
  #allocation1 [shape = 'u32[144,128]{1,0:T(1,128)}', space=vmem, size = 0x12000, scoped, tag = 'internal scratch']
  %s0 = inlined_call_operand.hbm [shape: f32[3], index: 0, kind: input, shape index: {}]
  %s1 = inlined_call_operand.vmem [shape: f32[3], index: 1, kind: input, shape index: {}]
  %s2 = inlined_call_operand.vmem [shape: f32[2,256], index: 2, kind: input, shape index: {}]
  %s3 = inlined_call_operand.hbm [shape: f32[2,768], index: 3, kind: output, shape index: {}]
  %s4 = sld [smem:[#allocation0]]
  $region53: #{tpu_custom_call.1} parent=0
    _
  %s6 = ssub.s32 1, %s4
  %s7 = scalar_select 0, %s6, %s4
  $region1: #{tpu_custom_call.1} parent=0
    #allocation2 [shape = 'u8[512]{0}', space=smem, size = 0x200, scoped, tag = 'input window, operand 0, single buffered']
    #allocation3 [shape = 's32[2]{0}', space=sflag, size = 0x8, scoped, tag = 'scoped memory for tpu_custom_call.1']
    #allocation4 [shape = 's32[2]{0}', space=sflag, size = 0x8, scoped, tag = 'scoped memory for tpu_custom_call.1']
    #allocation5 [shape = 's32[2]{0}', space=sflag, size = 0x8, scoped, tag = 'scoped memory for tpu_custom_call.1']
    #allocation6 [shape = 'u8[512]{0}', space=smem, size = 0x200, scoped, tag = 'input window, operand 1, single buffered']
    #allocation7 [shape = 'u8[2048]{0}', space=vmem, size = 0x800, scoped, tag = 'output window, operand 0']
    %8 = vsyncpa [#allocation4], 0
    %9 = vsyncpa [#allocation5], 0
    %10 = vsyncpa [#allocation3], 0
    %s11 = scalar_lea.sflag [#allocation3], 1
    %12 = vsyncpa %s11, 0
    loop: start=0, step=1, limit=8
    $region2: #{tpu_custom_call.1} parent=1 // loop_pre_header
      _
    $region3: #{tpu_custom_call.1} parent=1 // loop_header
      %s14 = sphi 0, %s18
      %p15 = scmp.ge.s32.totalorder %s14, 8
      %s21 = sphi 0, %s40
      %s22 = sphi 0, %s36
      %s23 = sphi 0, %s32
      %s24 = sphi 0, %s21
      %s25 = sphi 0, %s22
      %s26 = sphi 0, %s23
      %s27 = sphi 0, %s24
      %s28 = sphi 0, %s25
      %s29 = sphi 0, %s26
      %s41 = sphi 0, %s41
      %s43 = sphi 0, %s41
      %s44 = sphi 0, %s43
      %s58 = sphi 0, %s44
      %s62 = sphi 0, %s62
      %s64 = sphi 0, %s62
      %s65 = sphi 0, %s64
      %s79 = sphi 0, %s65
      %s87 = sphi 0, %s89
      %s90 = sphi 0, %s87
      %s91 = sphi 0, %s90
      %s107 = sphi 0, %s91
      %s119 = sphi 0, %s121
      %s122 = sphi 0, %s119
      %s123 = sphi 0, %s122
      %s139 = sphi 0, %s123
    $region4: #{tpu_custom_call.1} parent=1 // loop_header_branch
      %17 = sbr.rel (%p15) target = $region8
    $region5: #{tpu_custom_call.1} parent=1 // loop_body
      %s19 = ssub.s32 %s14, 1
      %s20 = ssub.s32 %s14, 2
      %s30 = sadd.s32 1, %s23
      %p31 = scmp.ge.s32.totalorder %s30, 3
      %s32 = scalar_select %p31, 0, %s30
      %s33 = sadd.s32 1, %s22
      %s34 = scalar_select %p31, %s33, %s22
      %p35 = scmp.ge.s32.totalorder %s34, 2
      %s36 = scalar_select %p35, 0, %s34
      %s37 = sadd.s32 1, %s21
      %s38 = scalar_select %p35, %s37, %s21
      %p39 = scmp.ge.s32.totalorder %s38, 1
      %s40 = scalar_select %p39, 0, %s38
      %s42 = sadd.s32 %s41, 1
      %p45 = scmp.eq.s32.totalorder %s14, 5
      %p46 = scmp.ne.s32.totalorder %s41, %s43
      %p47 = scmp.eq.s32.totalorder %s14, 0
      %p48 = por %p46, %p47
      %p49 = scmp.ne.s32.totalorder %s41, %s43
      %p50 = scmp.eq.s32.totalorder %s19, 5
      %p51 = por %p49, %p50
      %p52 = scmp.ne.s32.totalorder %s43, %s44
      %p53 = scmp.eq.s32.totalorder %s19, 0
      %p54 = por %p52, %p53
      %p55 = scmp.ne.s32.totalorder %s43, %s44
      %p56 = scmp.eq.s32.totalorder %s20, 5
      %p57 = por %p55, %p56
      %p59 = scmp.ne.s32.totalorder %s44, %s58
      %p60 = scmp.eq.s32.totalorder %s20, 0
      %p61 = por %p59, %p60
      %s63 = sadd.s32 %s62, 1
      %p66 = scmp.eq.s32.totalorder %s14, 5
      %p67 = scmp.ne.s32.totalorder %s62, %s64
      %p68 = scmp.eq.s32.totalorder %s14, 0
      %p69 = por %p67, %p68
      %p70 = scmp.ne.s32.totalorder %s62, %s64
      %p71 = scmp.eq.s32.totalorder %s19, 5
      %p72 = por %p70, %p71
      %p73 = scmp.ne.s32.totalorder %s64, %s65
      %p74 = scmp.eq.s32.totalorder %s19, 0
      %p75 = por %p73, %p74
      %p76 = scmp.ne.s32.totalorder %s64, %s65
      %p77 = scmp.eq.s32.totalorder %s20, 5
      %p78 = por %p76, %p77
      %p80 = scmp.ne.s32.totalorder %s65, %s79
      %p81 = scmp.eq.s32.totalorder %s20, 0
      %p82 = por %p80, %p81
      %s83 = ssub.s32 %s21, %s40
      %s84 = ssub.s32 %s22, %s36
      %s85 = sor.u32 %s83, %s84
      %p86 = scmp.eq.s32.totalorder %s85, 0
      %s88 = sadd.s32 %s87, 1
      %s89 = scalar_select %p86, %s87, %s88
      %p92 = pneg %p86
      %p93 = scmp.eq.s32.totalorder %s14, 5
      %p94 = por %p92, %p93
      %p95 = scmp.ne.s32.totalorder %s87, %s90
      %p96 = scmp.eq.s32.totalorder %s14, 0
      %p97 = por %p95, %p96
      %p98 = scmp.ne.s32.totalorder %s87, %s90
      %p99 = scmp.eq.s32.totalorder %s19, 5
      %p100 = por %p98, %p99
      %p101 = scmp.ne.s32.totalorder %s90, %s91
      %p102 = scmp.eq.s32.totalorder %s19, 0
      %p103 = por %p101, %p102
      %p104 = scmp.ne.s32.totalorder %s90, %s91
      %p105 = scmp.eq.s32.totalorder %s20, 5
      %p106 = por %p104, %p105
      %p108 = scmp.ne.s32.totalorder %s91, %s107
      %p109 = scmp.eq.s32.totalorder %s20, 0
      %p110 = por %p108, %p109
      %s111 = smul.u32 %s23, 2
      %s112 = sadd.s32 %s111, %s22
      %s113 = smul.u32 %s32, 2
      %s114 = sadd.s32 %s113, %s36
      %s115 = ssub.s32 %s21, %s40
      %s116 = ssub.s32 %s112, %s114
      %s117 = sor.u32 %s115, %s116
      %p118 = scmp.eq.s32.totalorder %s117, 0
      %s120 = sadd.s32 %s119, 1
      %s121 = scalar_select %p118, %s119, %s120
      %p124 = pneg %p118
      %p125 = scmp.eq.s32.totalorder %s14, 5
      %p126 = por %p124, %p125
      %p127 = scmp.ne.s32.totalorder %s119, %s122
      %p128 = scmp.eq.s32.totalorder %s14, 0
      %p129 = por %p127, %p128
      %p130 = scmp.ne.s32.totalorder %s119, %s122
      %p131 = scmp.eq.s32.totalorder %s19, 5
      %p132 = por %p130, %p131
      %p133 = scmp.ne.s32.totalorder %s122, %s123
      %p134 = scmp.eq.s32.totalorder %s19, 0
      %p135 = por %p133, %p134
      %p136 = scmp.ne.s32.totalorder %s122, %s123
      %p137 = scmp.eq.s32.totalorder %s20, 5
      %p138 = por %p136, %p137
      %p140 = scmp.ne.s32.totalorder %s123, %s139
      %p141 = scmp.eq.s32.totalorder %s20, 0
      %p142 = por %p140, %p141
      %p143 = scmp.le.s32.totalorder 1, %s14
      %p144 = scmp.lt.s32.totalorder %s14, 7
      %p145 = pnand %p143, %p144
      %p146 = pneg %p145
      // Predicated region
      $region9: #{tpu_custom_call.1} parent=5 // pred_check
        _
      $region10: #{tpu_custom_call.1} parent=5 // pred_check_branch
        %148 = sbr.rel (%p145) target = $region12
      $region11: #{tpu_custom_call.1} parent=5 // pred_region
        %s149 = ssub.s32 %s14, 1
        // Predicated region
        $region13: #{tpu_custom_call.1} parent=11 // pred_check
          %p150 = pneg %p54
        $region14: #{tpu_custom_call.1} parent=11 // pred_check_branch
          %152 = sbr.rel (%p150) target = $region16
        $region15: #{tpu_custom_call.1} parent=11 // pred_region
          %s154 = ssub.s32 16, 16
          %155 = vsyncadd [#allocation4], %s154
          %158 = dma.hbm_to_smem %s0, 16, [#allocation2], [#allocation4]
        $region16: #{tpu_custom_call.1} parent=11 // pred_fallthru
          _
        // Predicated region
        $region17: #{tpu_custom_call.1} parent=11 // pred_check
          %p159 = pneg %p75
        $region18: #{tpu_custom_call.1} parent=11 // pred_check_branch
          %161 = sbr.rel (%p159) target = $region20
        $region19: #{tpu_custom_call.1} parent=11 // pred_region
          %s163 = ssub.s32 16, 16
          %164 = vsyncadd [#allocation5], %s163
          %s166 = sshll.u32 %s1, 4
          %s167 = int_to_ptr.vmem [resolvable:$true] %s166
          %169 = dma.vmem_to_smem %s167, 16, [#allocation6], [#allocation5]
        $region20: #{tpu_custom_call.1} parent=11 // pred_fallthru
          _
      $region12: #{tpu_custom_call.1} parent=5 // pred_fallthru
        _
      %p170 = scmp.lt.s32.totalorder %s14, 6
      // Predicated region
      $region21: #{tpu_custom_call.1} parent=5 // pred_check
        %p171 = pneg %p170
      $region22: #{tpu_custom_call.1} parent=5 // pred_check_branch
        %173 = sbr.rel (%p171) target = $region24
      $region23: #{tpu_custom_call.1} parent=5 // pred_region
        // Predicated region
        $region25: #{tpu_custom_call.1} parent=23 // pred_check
          %p174 = pneg %p97
        $region26: #{tpu_custom_call.1} parent=23 // pred_check_branch
          %176 = sbr.rel (%p174) target = $region28
        $region27: #{tpu_custom_call.1} parent=23 // pred_region
          %p177 = scmp.lt.s32.totalorder %s21, 0
          %s178 = scalar_select %p177, %s21, 0
          %p179 = scmp.lt.s32.totalorder %s22, 1
          %s180 = scalar_select %p179, %s22, 1
          %s181 = smul.addr %s178, 2
          %s182 = sadd.s32 %s180, %s181
          %s183 = smul.addr %s182, 2
          %s184 = scalar_lea.vmem %s2, %s183
        $region28: #{tpu_custom_call.1} parent=23 // pred_fallthru
          _
      $region24: #{tpu_custom_call.1} parent=5 // pred_fallthru
        _
      %p185 = scmp.le.s32.totalorder 1, %s14
      %p186 = scmp.lt.s32.totalorder %s14, 7
      %p187 = pnand %p185, %p186
      %p188 = pneg %p187
      // Predicated region
      $region29: #{tpu_custom_call.1} parent=5 // pred_check
        _
      $region30: #{tpu_custom_call.1} parent=5 // pred_check_branch
        %190 = sbr.rel (%p187) target = $region32
      $region31: #{tpu_custom_call.1} parent=5 // pred_region
        %s191 = ssub.s32 %s14, 1
        // Predicated region
        $region33: #{tpu_custom_call.1} parent=31 // pred_check
          %p192 = pneg %p54
        $region34: #{tpu_custom_call.1} parent=31 // pred_check_branch
          %194 = sbr.rel (%p192) target = $region36
        $region35: #{tpu_custom_call.1} parent=31 // pred_region
          %195 = dma.done [#allocation4], 16
        $region36: #{tpu_custom_call.1} parent=31 // pred_fallthru
          _
        // Predicated region
        $region37: #{tpu_custom_call.1} parent=31 // pred_check
          %p196 = pneg %p75
        $region38: #{tpu_custom_call.1} parent=31 // pred_check_branch
          %198 = sbr.rel (%p196) target = $region40
        $region39: #{tpu_custom_call.1} parent=31 // pred_region
          %199 = dma.done [#allocation5], 16
        $region40: #{tpu_custom_call.1} parent=31 // pred_fallthru
          _
        %200 = sfence
        %p201 = pneg %p54
        %p202 = pneg %p51
        %p203 = pneg %p75
        %p204 = pneg %p72
        %p205 = scmp.lt.s32.totalorder %s24, 0
        %s206 = scalar_select %p205, %s24, 0
        %p207 = scmp.lt.s32.totalorder %s25, 1
        %s208 = scalar_select %p207, %s25, 1
        %s209 = smul.addr %s206, 2
        %s210 = sadd.s32 %s208, %s209
        %s211 = smul.addr %s210, 2
        %s212 = scalar_lea.vmem %s2, %s211
        %p213 = pneg %p103
        %p214 = pneg %p100
        %p215 = pneg %p135
        %p216 = pneg %p132
        %s217 = sand.u32 %s122, 1
        %s218 = scalar_lea.sflag [#allocation3], %s217
        %s219 = sand.u32 %s122, 1
        %s220 = smul.addr %s219, 2
        %s221 = scalar_lea.vmem [#allocation7], %s220
        %p222 = scmp.lt.s32.totalorder %s24, 0
        %s223 = scalar_select %p222, %s24, 0
        %p224 = scmp.lt.s32.totalorder %s25, 1
        %s225 = scalar_select %p224, %s25, 1
        %s226 = smul.addr %s223, 2
        %s227 = sadd.s32 %s225, %s226
        %s228 = smul.addr %s227, 2
        %s229 = scalar_lea.vmem %s2, %s228
        %s230 = smul.u32 %s26, 2
        %s231 = sadd.s32 %s230, %s25
        %v232 = vld [vmem:[%s229] sm:$0x3]
        %s233 = sld [smem:[#allocation2 + %s26]]
        %v234 = vstv %s233
        %v235 = vmul.f32 %v232, %v234
        %s236 = sld [smem:[#allocation6 + %s26]]
        %v237 = vstv %s236
        %v238 = vadd.f32 %v235, %v237
        %239 = vst [vmem:[%s221] sm:$0x3] %v238
        %s240 = sand.u32 %s122, 1
        %s241 = scalar_lea.sflag [#allocation3], %s240
        %s242 = sand.u32 %s122, 1
        %s243 = smul.addr %s242, 2
        %s244 = scalar_lea.vmem [#allocation7], %s243
        // Predicated region
        $region41: #{tpu_custom_call.1} parent=31 // pred_check
          %p245 = pneg %p132
        $region42: #{tpu_custom_call.1} parent=31 // pred_check_branch
          %247 = sbr.rel (%p245) target = $region44
        $region43: #{tpu_custom_call.1} parent=31 // pred_region
          %s248 = smul.u32 %s26, 2
          %s249 = sadd.s32 %s248, %s25
          %s251 = ssub.s32 32, 32
          %252 = vsyncadd %s241, %s251
          %s253 = smul.addr %s24, 6
          %s254 = sadd.s32 %s249, %s253
          %s255 = smul.addr %s254, 32
          %s256 = scalar_lea.hbm %s3, %s255
          %s258 = sshll.u32 %s244, 4
          %s259 = int_to_ptr.vmem [resolvable:$true] %s258
          %261 = dma.vmem_to_hbm [thread:$0]  %s259, 32, %s256, %s241
        $region44: #{tpu_custom_call.1} parent=31 // pred_fallthru
          _
      $region32: #{tpu_custom_call.1} parent=5 // pred_fallthru
        _
      %p262 = scmp.le.s32.totalorder 2, %s14
      // Predicated region
      $region45: #{tpu_custom_call.1} parent=5 // pred_check
        %p263 = pneg %p262
      $region46: #{tpu_custom_call.1} parent=5 // pred_check_branch
        %265 = sbr.rel (%p263) target = $region48
      $region47: #{tpu_custom_call.1} parent=5 // pred_region
        %s266 = ssub.s32 %s14, 2
        // Predicated region
        $region49: #{tpu_custom_call.1} parent=47 // pred_check
          %p267 = pneg %p138
        $region50: #{tpu_custom_call.1} parent=47 // pred_check_branch
          %269 = sbr.rel (%p267) target = $region52
        $region51: #{tpu_custom_call.1} parent=47 // pred_region
          %s270 = sand.u32 %s123, 1
          %s271 = scalar_lea.sflag [#allocation3], %s270
          %s272 = sand.u32 %s123, 1
          %s273 = smul.addr %s272, 2
          %s274 = scalar_lea.vmem [#allocation7], %s273
          %275 = dma.done %s271, 32
        $region52: #{tpu_custom_call.1} parent=47 // pred_fallthru
          _
      $region48: #{tpu_custom_call.1} parent=5 // pred_fallthru
        _
    $region6: #{tpu_custom_call.1} parent=1 // loop_footer
      %s18 = sadd.s32 1, %s14
    $region7: #{tpu_custom_call.1} parent=1 // loop_footer_branch
      %13 = sbr.rel target = $region3
    $region8: #{tpu_custom_call.1} parent=1 // loop_exit
      _
    %276 = vsyncpa [#allocation3], 1
    %s277 = scalar_lea.sflag [#allocation3], 1
    %278 = vsyncpa %s277, 1
    %279 = vsyncpa [#allocation4], 1
    %s280 = scalar_lea.sflag [#allocation4], 1
    %281 = vsyncpa %s280, 1
    %282 = vsyncpa [#allocation5], 1
    %s283 = scalar_lea.sflag [#allocation5], 1
    %284 = vsyncpa %s283, 1

</llo_original>
